<compile_context>
chip_gen: v6e
topology: v6e:2x2x1
jax: 0.10.0
libtpu: 0.0.40
codegen_flags: <defaults>
</compile_context>

<pallas_src>
import functools
import math

import jax
import jax.numpy as jnp
from jax.experimental import pallas as pl
from jax.experimental.pallas import tpu as pltpu


# ---------------------------------------------------------------------------
# Head split / merge (layout glue, mirrors torch transpose_qkv / transpose_output)
# ---------------------------------------------------------------------------
def transpose_qkv(X, num_heads):
    B, S, H = X.shape
    X = X.reshape(B, S, num_heads, H // num_heads)
    X = jnp.transpose(X, (0, 2, 1, 3))
    return X.reshape(B * num_heads, S, H // num_heads)


def transpose_output(X, num_heads):
    BH, S, Dh = X.shape
    B = BH // num_heads
    X = X.reshape(B, num_heads, S, Dh)
    X = jnp.transpose(X, (0, 2, 1, 3))
    return X.reshape(B, S, num_heads * Dh)


# ---------------------------------------------------------------------------
# Tiled matmul kernel — used for the W_q / W_k / W_v / W_o projections
# ---------------------------------------------------------------------------
def _matmul_kernel(x_ref, w_ref, o_ref, acc_ref):
    @pl.when(pl.program_id(2) == 0)
    def _():
        acc_ref[...] = jnp.zeros_like(acc_ref)

    acc_ref[...] += jnp.dot(x_ref[...], w_ref[...],
                            preferred_element_type=jnp.float32)

    @pl.when(pl.program_id(2) == pl.num_programs(2) - 1)
    def _():
        o_ref[...] = acc_ref[...].astype(o_ref.dtype)


def _pick_tile(dim, pref):
    # Preferred tile only when it divides the dim; otherwise use the full
    # extent (always legal w.r.t. the (8, 128) block constraint).
    return pref if (dim >= pref and dim % pref == 0) else dim


def linear(x2d, w, *, tm=256, tn=256, tk=512):
    """(M, K) @ (K, N) -> (M, N) via a tiled MXU matmul kernel."""
    M, K = x2d.shape
    K2, N = w.shape
    assert K == K2
    tm, tn, tk = _pick_tile(M, tm), _pick_tile(N, tn), _pick_tile(K, tk)
    return pl.pallas_call(
        _matmul_kernel,
        out_shape=jax.ShapeDtypeStruct((M, N), x2d.dtype),
        grid_spec=pltpu.PrefetchScalarGridSpec(
            num_scalar_prefetch=0,
            grid=(M // tm, N // tn, K // tk),
            in_specs=[pl.BlockSpec((tm, tk), lambda i, j, k: (i, k)),
                      pl.BlockSpec((tk, tn), lambda i, j, k: (k, j))],
            out_specs=pl.BlockSpec((tm, tn), lambda i, j, k: (i, j)),
            scratch_shapes=[pltpu.VMEM((tm, tn), jnp.float32)],
        ),
        compiler_params=pltpu.CompilerParams(
            dimension_semantics=("parallel", "parallel", "arbitrary")),
    )(x2d, w)


# ---------------------------------------------------------------------------
# Scaled dot-product attention kernel: one grid step per (batch * head)
# ---------------------------------------------------------------------------
def _attention_kernel(vl_ref, q_ref, k_ref, v_ref, o_ref, *, scale):
    bh = pl.program_id(0)
    q = q_ref[0]                     # (Sq, Dh)
    k = k_ref[0]                     # (Sk, Dh)
    v = v_ref[0]                     # (Sk, Dh)

    scores = jnp.dot(q, k.T, preferred_element_type=jnp.float32) * scale  # (Sq, Sk)

    # valid_lens masking (d2l.masked_softmax semantics: fill with -1e6)
    valid = vl_ref[bh]
    col = jax.lax.broadcasted_iota(jnp.int32, scores.shape, 1)
    scores = jnp.where(col < valid, scores, jnp.float32(-1e6))

    # numerically-stable softmax along keys
    m = jnp.max(scores, axis=-1, keepdims=True)
    p = jnp.exp(scores - m)
    attn = p / jnp.sum(p, axis=-1, keepdims=True)
    # TODO(synk): training-mode dropout on the attention weights is omitted
    # (eval-mode forward); pltpu.prng_* is not usable under interpret mode.

    o_ref[0] = jnp.dot(attn.astype(v.dtype), v,
                       preferred_element_type=jnp.float32).astype(o_ref.dtype)


def dot_product_attention(q, k, v, valid_lens, *, scale):
    """q/k/v: (B*num_heads, S, Dh); valid_lens: int32 (B*num_heads,)."""
    BH, Sq, Dh = q.shape
    _, Sk, _ = k.shape
    kernel = functools.partial(_attention_kernel, scale=scale)
    return pl.pallas_call(
        kernel,
        out_shape=jax.ShapeDtypeStruct((BH, Sq, Dh), q.dtype),
        grid_spec=pltpu.PrefetchScalarGridSpec(
            num_scalar_prefetch=1,               # valid_lens -> SMEM
            grid=(BH,),
            in_specs=[pl.BlockSpec((1, Sq, Dh), lambda b, vl: (b, 0, 0)),
                      pl.BlockSpec((1, Sk, Dh), lambda b, vl: (b, 0, 0)),
                      pl.BlockSpec((1, Sk, Dh), lambda b, vl: (b, 0, 0))],
            out_specs=pl.BlockSpec((1, Sq, Dh), lambda b, vl: (b, 0, 0)),
        ),
        compiler_params=pltpu.CompilerParams(
            dimension_semantics=("parallel",)),
    )(valid_lens, q, k, v)


# ---------------------------------------------------------------------------
# Full MultiHeadAttention forward
# ---------------------------------------------------------------------------
def multi_head_attention(queries, keys, values, valid_lens, params, num_heads):
    W_q, W_k, W_v, W_o = params
    B, Sq, _ = queries.shape
    _, Sk, _ = keys.shape
    H = W_q.shape[1]
    Dh = H // num_heads

    def proj(x, w):
        Bx, Sx, Dx = x.shape
        return linear(x.reshape(Bx * Sx, Dx), w).reshape(Bx, Sx, H)

    q = transpose_qkv(proj(queries, W_q), num_heads)   # (B*nh, Sq, Dh)
    k = transpose_qkv(proj(keys, W_k), num_heads)      # (B*nh, Sk, Dh)
    v = transpose_qkv(proj(values, W_v), num_heads)    # (B*nh, Sk, Dh)

    if valid_lens is None:
        vl = jnp.full((B * num_heads,), Sk, dtype=jnp.int32)
    else:
        vl = jnp.repeat(valid_lens.astype(jnp.int32), num_heads, axis=0)

    out = dot_product_attention(q, k, v, vl, scale=1.0 / math.sqrt(Dh))
    out_concat = transpose_output(out, num_heads)      # (B, Sq, H)
    return linear(out_concat.reshape(B * Sq, H), W_o).reshape(B, Sq, H)


# ---------------------------------------------------------------------------
# Pure-JAX reference (for correctness check)
# ---------------------------------------------------------------------------
def _reference_mha(queries, keys, values, valid_lens, params, num_heads):
    W_q, W_k, W_v, W_o = params
    q = transpose_qkv(queries @ W_q, num_heads)
    k = transpose_qkv(keys @ W_k, num_heads)
    v = transpose_qkv(values @ W_v, num_heads)
    Dh = q.shape[-1]
    scores = jnp.einsum("bqd,bkd->bqk", q, k) / math.sqrt(Dh)
    if valid_lens is not None:
        vl = jnp.repeat(valid_lens.astype(jnp.int32), num_heads, axis=0)
        mask = jnp.arange(k.shape[1])[None, None, :] < vl[:, None, None]
        scores = jnp.where(mask, scores, -1e6)
    attn = jax.nn.softmax(scores, axis=-1)
    out = jnp.einsum("bqk,bkd->bqd", attn, v)
    return transpose_output(out, num_heads) @ W_o


# ---------------------------------------------------------------------------
# Demo / smoke test
# ---------------------------------------------------------------------------
if __name__ == "__main__":
    num_hiddens, num_heads = 32, 4
    batch, seq_q, seq_kv = 2, 8, 8
    dropout_p = 0.1  # identity in eval-mode forward

    key = jax.random.PRNGKey(0)
    kq, kk, kv, k1, k2, k3, k4 = jax.random.split(key, 7)
    queries = jax.random.normal(kq, (batch, seq_q, num_hiddens), jnp.float32)
    keys_in = jax.random.normal(kk, (batch, seq_kv, num_hiddens), jnp.float32)
    values = jax.random.normal(kv, (batch, seq_kv, num_hiddens), jnp.float32)

    w_scale = 1.0 / math.sqrt(num_hiddens)
    W_q = jax.random.normal(k1, (num_hiddens, num_hiddens), jnp.float32) * w_scale
    W_k = jax.random.normal(k2, (num_hiddens, num_hiddens), jnp.float32) * w_scale
    W_v = jax.random.normal(k3, (num_hiddens, num_hiddens), jnp.float32) * w_scale
    W_o = jax.random.normal(k4, (num_hiddens, num_hiddens), jnp.float32) * w_scale
    params = (W_q, W_k, W_v, W_o)

    valid_lens = jnp.array([3, 5], dtype=jnp.int32)

    out = multi_head_attention(queries, keys_in, values, valid_lens,
                               params, num_heads)
    out = jax.block_until_ready(out)
    assert out.shape == (batch, seq_q, num_hiddens)

    ref = _reference_mha(queries, keys_in, values, valid_lens, params, num_heads)
    max_err = float(jnp.max(jnp.abs(out - ref)))
    assert jnp.allclose(out, ref, atol=2e-3, rtol=2e-3), max_err

    print("KERNEL_OK")
</pallas_src>

<mosaic_0001>
module attributes {stable_mosaic.version = 11 : i64} {
  func.func @_matmul_kernel(%arg0: i32, %arg1: i32, %arg2: i32, %arg3: memref<16x32xf32, #tpu.memory_space<vmem>>, %arg4: memref<32x32xf32, #tpu.memory_space<vmem>>, %arg5: memref<16x32xf32, #tpu.memory_space<vmem>>, %arg6: memref<16x32xf32, #tpu.memory_space<vmem>>) attributes {dimension_semantics = [#tpu.dimension_semantics<parallel>, #tpu.dimension_semantics<parallel>, #tpu.dimension_semantics<arbitrary>], iteration_bounds = array<i64: 1, 1, 1>, scalar_prefetch = 0 : i64, scratch_operands = 1 : i64, tpu.core_type = #tpu.core_type<tc>, window_params = [{transform_indices = @transform_0, window_bounds = array<i64: 16, 32>}, {transform_indices = @transform_1, window_bounds = array<i64: 32, 32>}, {transform_indices = @transform_2, window_bounds = array<i64: 16, 32>}]} {
    %c0_i32 = arith.constant 0 : i32
    %0 = arith.cmpi eq, %arg2, %c0_i32 : i32
    %1 = arith.extui %0 : i1 to i32
    %c0_i32_0 = arith.constant 0 : i32
    %2 = arith.cmpi ne, %1, %c0_i32_0 : i32
    scf.if %2 {
      %cst_10 = arith.constant 0.000000e+00 : f32
      %12 = vector.broadcast %cst_10 : f32 to vector<16x32xf32>
      %c0_11 = arith.constant 0 : index
      %c0_12 = arith.constant 0 : index
      %13 = vector.load %arg6[%c0_11, %c0_12] : memref<16x32xf32, #tpu.memory_space<vmem>>, vector<16x32xf32>
      tpu.vector_store %arg6[%c0_11, %c0_12], %12 {strides = array<i32>} : memref<16x32xf32, #tpu.memory_space<vmem>>, vector<16x32xf32>,
    } else {
    }
    %c0 = arith.constant 0 : index
    %c0_1 = arith.constant 0 : index
    %3 = vector.load %arg6[%c0, %c0_1] : memref<16x32xf32, #tpu.memory_space<vmem>>, vector<16x32xf32>
    %c0_2 = arith.constant 0 : index
    %c0_3 = arith.constant 0 : index
    %4 = vector.load %arg3[%c0_2, %c0_3] : memref<16x32xf32, #tpu.memory_space<vmem>>, vector<16x32xf32>
    %c0_4 = arith.constant 0 : index
    %c0_5 = arith.constant 0 : index
    %5 = vector.load %arg4[%c0_4, %c0_5] : memref<32x32xf32, #tpu.memory_space<vmem>>, vector<32x32xf32>
    %cst = arith.constant dense<0.000000e+00> : vector<16x32xf32>
    %6 = tpu.matmul %4, %5, %cst {dimension_numbers = #tpu.dot_dimension_numbers<[1], [0], [0], [1], [0, 0, 1, 1], [], []>} : vector<16x32xf32>, vector<32x32xf32>, vector<16x32xf32> -> vector<16x32xf32>
    %7 = arith.addf %3, %6 : vector<16x32xf32>
    %c0_6 = arith.constant 0 : index
    %c0_7 = arith.constant 0 : index
    %8 = vector.load %arg6[%c0_6, %c0_7] : memref<16x32xf32, #tpu.memory_space<vmem>>, vector<16x32xf32>
    tpu.vector_store %arg6[%c0_6, %c0_7], %7 {strides = array<i32>} : memref<16x32xf32, #tpu.memory_space<vmem>>, vector<16x32xf32>,
    %c0_i32_8 = arith.constant 0 : i32
    %9 = arith.cmpi eq, %arg2, %c0_i32_8 : i32
    %10 = arith.extui %9 : i1 to i32
    %c0_i32_9 = arith.constant 0 : i32
    %11 = arith.cmpi ne, %10, %c0_i32_9 : i32
    scf.if %11 {
      %c0_10 = arith.constant 0 : index
      %c0_11 = arith.constant 0 : index
      %12 = vector.load %arg6[%c0_10, %c0_11] : memref<16x32xf32, #tpu.memory_space<vmem>>, vector<16x32xf32>
      %c0_12 = arith.constant 0 : index
      %c0_13 = arith.constant 0 : index
      %13 = vector.load %arg5[%c0_12, %c0_13] : memref<16x32xf32, #tpu.memory_space<vmem>>, vector<16x32xf32>
      tpu.vector_store %arg5[%c0_12, %c0_13], %12 {strides = array<i32>} : memref<16x32xf32, #tpu.memory_space<vmem>>, vector<16x32xf32>,
    } else {
    }
    return
  }
  func.func @transform_0(%arg0: i32, %arg1: i32, %arg2: i32) -> (i32, i32) {
    %c0_i32 = arith.constant 0 : i32
    return %arg0, %arg2 : i32, i32
  }
  func.func @transform_1(%arg0: i32, %arg1: i32, %arg2: i32) -> (i32, i32) {
    %c0_i32 = arith.constant 0 : i32
    return %arg2, %arg1 : i32, i32
  }
  func.func @transform_2(%arg0: i32, %arg1: i32, %arg2: i32) -> (i32, i32) {
    %c0_i32 = arith.constant 0 : i32
    return %arg0, %arg1 : i32, i32
  }
}

</mosaic_0001>

<llo_original>
// kernel: tpu_custom_call.1
$region0: #{tpu_custom_call.1}
  #allocation0 [shape = 'u32[]', space=smem, size = 0x4, offset = 0x4, fixed_abs, tag = 'smem constant byte address 0x4 - core index']
  #allocation1 [shape = 'u32[144,128]{1,0:T(1,128)}', space=vmem, size = 0x12000, scoped, tag = 'internal scratch']
  #allocation2 [shape = 'f32[16,32]{1,0:T(8,128)}', space=vmem, size = 0x2000, scoped, tag = 'scratch operand']
  %s0 = inlined_call_operand.hbm [shape: f32[16,32], index: 0, kind: input, shape index: {}]
  %s1 = inlined_call_operand.hbm [shape: f32[32,32], index: 1, kind: input, shape index: {}]
  %s2 = inlined_call_operand.hbm [shape: f32[16,32], index: 2, kind: output, shape index: {}]
  %s3 = sld [smem:[#allocation0]]
  $region34: #{tpu_custom_call.1} parent=0
    _
  %s5 = ssub.s32 1, %s3
  %s6 = scalar_select 0, %s5, %s3
  $region1: #{tpu_custom_call.1} parent=0
    #allocation3 [shape = 'u8[8192]{0}', space=vmem, size = 0x2000, scoped, tag = 'input window, operand 0, single buffered']
    #allocation4 [shape = 's32[1]{0}', space=sflag, size = 0x4, scoped, tag = 'scoped memory for tpu_custom_call.1']
    #allocation5 [shape = 's32[1]{0}', space=sflag, size = 0x4, scoped, tag = 'scoped memory for tpu_custom_call.1']
    #allocation6 [shape = 'u8[16384]{0}', space=vmem, size = 0x4000, scoped, tag = 'input window, operand 1, single buffered']
    #allocation7 [shape = 's32[1]{0}', space=sflag, size = 0x4, scoped, tag = 'scoped memory for tpu_custom_call.1']
    #allocation8 [shape = 'u8[8192]{0}', space=vmem, size = 0x2000, scoped, tag = 'output window, operand 0, single buffered']
    %7 = vsyncpa [#allocation4], 0
    %8 = vsyncpa [#allocation7], 0
    %9 = vsyncpa [#allocation5], 0
    // Predicated region
    $region2: #{tpu_custom_call.1} parent=1 // pred_check
      _
    $region3: #{tpu_custom_call.1} parent=1 // pred_check_branch
      %11 = sbr.rel (0) target = $region5
    $region4: #{tpu_custom_call.1} parent=1 // pred_region
      %s13 = ssub.s32 256, 256
      %14 = vsyncadd [#allocation4], %s13
      %s15 = sshll.u32 [#allocation3], 4
      %s16 = int_to_ptr.vmem [resolvable:$true] %s15
      %21 = dma.hbm_to_vmem [thread:$0]  %s0, 256, %s16, [#allocation4], 128, 128, 8
    $region5: #{tpu_custom_call.1} parent=1 // pred_fallthru
      _
    // Predicated region
    $region6: #{tpu_custom_call.1} parent=1 // pred_check
      _
    $region7: #{tpu_custom_call.1} parent=1 // pred_check_branch
      %23 = sbr.rel (0) target = $region9
    $region8: #{tpu_custom_call.1} parent=1 // pred_region
      %s25 = ssub.s32 512, 512
      %26 = vsyncadd [#allocation7], %s25
      %s27 = sshll.u32 [#allocation6], 4
      %s28 = int_to_ptr.vmem [resolvable:$true] %s27
      %33 = dma.hbm_to_vmem [thread:$0]  %s1, 512, %s28, [#allocation7], 128, 128, 8
    $region9: #{tpu_custom_call.1} parent=1 // pred_fallthru
      _
    // Predicated region
    $region10: #{tpu_custom_call.1} parent=1 // pred_check
      _
    $region11: #{tpu_custom_call.1} parent=1 // pred_check_branch
      %35 = sbr.rel (0) target = $region13
    $region12: #{tpu_custom_call.1} parent=1 // pred_region
      %36 = dma.done [#allocation4], 256
    $region13: #{tpu_custom_call.1} parent=1 // pred_fallthru
      _
    // Predicated region
    $region14: #{tpu_custom_call.1} parent=1 // pred_check
      _
    $region15: #{tpu_custom_call.1} parent=1 // pred_check_branch
      %38 = sbr.rel (0) target = $region17
    $region16: #{tpu_custom_call.1} parent=1 // pred_region
      %39 = dma.done [#allocation7], 512
    $region17: #{tpu_custom_call.1} parent=1 // pred_fallthru
      _
    %p40 = scmp.eq.s32.totalorder 0, 0
    // Predicated region
    $region18: #{tpu_custom_call.1} parent=1 // pred_check
      %p41 = pneg %p40
    $region19: #{tpu_custom_call.1} parent=1 // pred_check_branch
      %43 = sbr.rel (%p41) target = $region21
    $region20: #{tpu_custom_call.1} parent=1 // pred_region
      %vm44 = vcmask 261120
      %45 = vst.msk [vmem:[#allocation2] sm:$0xff] %vm44, 0.0
      %46 = vst.msk [vmem:[#allocation2 + $0x8] sm:$0xff] %vm44, 0.0
    $region21: #{tpu_custom_call.1} parent=1 // pred_fallthru
      _
    %v47 = vld [vmem:[#allocation2] sm:$0xff]
    %v48 = vld [vmem:[#allocation2 + $0x8] sm:$0xff]
    %v49 = vld [vmem:[#allocation3] sm:$0xff]
    %v50 = vld [vmem:[#allocation3 + $0x8] sm:$0xff]
    %v51 = vld [vmem:[#allocation6] sm:$0xff]
    %v52 = vld [vmem:[#allocation6 + $0x8] sm:$0xff]
    %v53 = vld [vmem:[#allocation6 + $0x10] sm:$0xff]
    %v54 = vld [vmem:[#allocation6 + $0x18] sm:$0xff]
    %vm55 = vcmask 261120
    %v57 = vsel %vm55, %v49, 0
    %v60 = vsel %vm55, %v50, 0
    %62 = vmatprep.subr.mxu0 0.0
    %63 = vmatpush1.msra.mxu0 0.0
    %64 = vmatprep.subr.mxu0 0.0
    %65 = vmatpush1.msra.mxu0 0.0
    %66 = vmatprep.subr.mxu0 0.0
    %67 = vmatpush1.msra.mxu0 0.0
    %68 = vmatprep.subr.mxu0 0.0
    %69 = vmatpush1.msra.mxu0 0.0
    %70 = vmatprep.subr.mxu0 0.0
    %71 = vmatpush1.msra.mxu0 0.0
    %72 = vmatprep.subr.mxu0 0.0
    %73 = vmatpush1.msra.mxu0 0.0
    %74 = vmatprep.subr.mxu0 0.0
    %75 = vmatpush1.msra.mxu0 0.0
    %76 = vmatprep.subr.mxu0 0.0
    %77 = vmatpush1.msra.mxu0 0.0
    %78 = vmatprep.subr.mxu0 0.0
    %79 = vmatpush1.msra.mxu0 0.0
    %80 = vmatprep.subr.mxu0 0.0
    %81 = vmatpush1.msra.mxu0 0.0
    %82 = vmatprep.subr.mxu0 0.0
    %83 = vmatpush1.msra.mxu0 0.0
    %84 = vmatprep.subr.mxu0 0.0
    %85 = vmatpush1.msra.mxu0 0.0
    %86 = vmatprep.subr.mxu0 0.0
    %87 = vmatpush1.msra.mxu0 %v54
    %88 = vmatprep.subr.mxu0 0.0
    %89 = vmatpush1.msra.mxu0 %v53
    %90 = vmatprep.subr.mxu0 0.0
    %91 = vmatpush1.msra.mxu0 %v52
    %92 = vmatprep.subr.mxu0 0.0
    %93 = vmatpush1.msra.mxu0 %v51
    %94 = vmatprep.subr.mxu0 0.0
    %95 = vmatpush2.msra.mxu0 0.0
    %96 = vmatprep.subr.mxu0 0.0
    %97 = vmatpush2.msra.mxu0 0.0
    %98 = vmatprep.subr.mxu0 0.0
    %99 = vmatpush2.msra.mxu0 0.0
    %100 = vmatprep.subr.mxu0 0.0
    %101 = vmatpush2.msra.mxu0 0.0
    %102 = vmatprep.subr.mxu0 0.0
    %103 = vmatpush2.msra.mxu0 0.0
    %104 = vmatprep.subr.mxu0 0.0
    %105 = vmatpush2.msra.mxu0 0.0
    %106 = vmatprep.subr.mxu0 0.0
    %107 = vmatpush2.msra.mxu0 0.0
    %108 = vmatprep.subr.mxu0 0.0
    %109 = vmatpush2.msra.mxu0 0.0
    %110 = vmatprep.subr.mxu0 0.0
    %111 = vmatpush2.msra.mxu0 0.0
    %112 = vmatprep.subr.mxu0 0.0
    %113 = vmatpush2.msra.mxu0 0.0
    %114 = vmatprep.subr.mxu0 0.0
    %115 = vmatpush2.msra.mxu0 0.0
    %116 = vmatprep.subr.mxu0 0.0
    %117 = vmatpush2.msra.mxu0 0.0
    %118 = vmatprep.subr.mxu0 0.0
    %119 = vmatpush2.msra.mxu0 0.0
    %120 = vmatprep.subr.mxu0 0.0
    %121 = vmatpush2.msra.mxu0 0.0
    %122 = vmatprep.subr.mxu0 0.0
    %123 = vmatpush2.msra.mxu0 0.0
    %124 = vmatprep.subr.mxu0 0.0
    %125 = vmatpush2.msra.mxu0 0.0
    %126 = vmatprep.mubr.f32.mxu0 0.0
    %127 = vmatmul.mubr.f32.gmra.mxu0 %v57
    %v128 = vpop.f32.mrf.mxu0
    %v129 = vadd.f32 0.0, %v128
    %v130 = vpop.f32.mrf.mxu0
    %131 = vmatprep.mubr.f32.mxu0 0.0
    %132 = vmatmul.mubr.f32.gmra.mxu0 %v60
    %v133 = vpop.f32.mrf.mxu0
    %v134 = vadd.f32 0.0, %v133
    %v135 = vpop.f32.mrf.mxu0
    %136 = vdwg.mxu0
    %v137 = vadd.f32 %v47, %v129
    %v138 = vadd.f32 %v48, %v134
    %139 = vst.msk [vmem:[#allocation2] sm:$0xff] %vm55, %v137
    %140 = vst.msk [vmem:[#allocation2 + $0x8] sm:$0xff] %vm55, %v138
    // Predicated region
    $region22: #{tpu_custom_call.1} parent=1 // pred_check
      %p141 = pneg %p40
    $region23: #{tpu_custom_call.1} parent=1 // pred_check_branch
      %143 = sbr.rel (%p141) target = $region25
    $region24: #{tpu_custom_call.1} parent=1 // pred_region
      %v144 = vld [vmem:[#allocation2] sm:$0xff]
      %v145 = vld [vmem:[#allocation2 + $0x8] sm:$0xff]
      %146 = vst.msk [vmem:[#allocation8] sm:$0xff] %vm55, %v144
      %147 = vst.msk [vmem:[#allocation8 + $0x8] sm:$0xff] %vm55, %v145
    $region25: #{tpu_custom_call.1} parent=1 // pred_fallthru
      _
    // Predicated region
    $region26: #{tpu_custom_call.1} parent=1 // pred_check
      _
    $region27: #{tpu_custom_call.1} parent=1 // pred_check_branch
      %149 = sbr.rel (0) target = $region29
    $region28: #{tpu_custom_call.1} parent=1 // pred_region
      %s151 = ssub.s32 256, 256
      %152 = vsyncadd [#allocation5], %s151
      %s153 = sshll.u32 [#allocation8], 4
      %s154 = int_to_ptr.vmem [resolvable:$true] %s153
      %159 = dma.vmem_to_hbm [thread:$0]  %s154, 256, %s2, [#allocation5], 128, 128, 8
    $region29: #{tpu_custom_call.1} parent=1 // pred_fallthru
      _
    // Predicated region
    $region30: #{tpu_custom_call.1} parent=1 // pred_check
      _
    $region31: #{tpu_custom_call.1} parent=1 // pred_check_branch
      %161 = sbr.rel (0) target = $region33
    $region32: #{tpu_custom_call.1} parent=1 // pred_region
      %162 = dma.done [#allocation5], 256
    $region33: #{tpu_custom_call.1} parent=1 // pred_fallthru
      _
    %163 = vsyncpa [#allocation4], 1
    %164 = vsyncpa [#allocation7], 1
    %165 = vsyncpa [#allocation5], 1

</llo_original>
